<compile_context>
chip_gen: v7x
topology: tpu7x:2x2x1
jax: 0.10.0
libtpu: 0.0.40
codegen_flags: <defaults>
</compile_context>

<pallas_src>
import functools

import jax
import jax.numpy as jnp
from jax import lax
from jax.experimental import pallas as pl
from jax.experimental.pallas import tpu as pltpu

LANE = 128      # vreg lane width (last dim)
SUBLANE = 8     # vreg sublane width (second-to-last dim)


def _round_up(n, m):
    return ((n + m - 1) // m) * m


# ----------------------------------------------------------------------------
# Fused kernel: one batch tile through every layer.
# refs = (x, w_hidden_0..w_hidden_{H-1}, b_hidden_stack, w_last, b_last, o)
# ----------------------------------------------------------------------------
def _fused_mlp_kernel(x_ref, *rest, n_hidden, hidden_npads, use_bf16):
    w_refs = rest[:n_hidden]
    b_hidden_ref = rest[n_hidden]          # (max(1,H), Nmax_pad) stacked biases
    w_last_ref = rest[n_hidden + 1]        # (out_dim, Kpad_last)  (nn.Linear layout)
    b_last_ref = rest[n_hidden + 2]        # (out_dim, 1)
    o_ref = rest[n_hidden + 3]             # (1, out_dim, tb)

    mxu_dtype = jnp.bfloat16 if use_bf16 else jnp.float32

    h = x_ref[...]                         # (tb, kpad0) f32, lane-dense
    for i in range(n_hidden):
        w = w_refs[i][...]                                   # (Kpad_i, Npad_i)
        b = b_hidden_ref[i:i + 1, :hidden_npads[i]]          # (1, Npad_i) static
        h = jnp.dot(h.astype(mxu_dtype), w.astype(mxu_dtype),
                    preferred_element_type=jnp.float32) + b
        h = jnp.maximum(h, 0.0)                              # ReLU (hidden only)

    # Final layer: contract h's lane dim against the (out_dim, K) weight
    # (trans-B matmul, same as q @ k.T) -> lane-dense (out_dim, tb) result.
    out_t = lax.dot_general(
        w_last_ref[...].astype(mxu_dtype), h.astype(mxu_dtype),
        (((1,), (1,)), ((), ())), preferred_element_type=jnp.float32)
    out_t = out_t + b_last_ref[...]                          # broadcast over tb
    o_ref[...] = out_t[None].astype(o_ref.dtype)             # (1, out_dim, tb)


# ----------------------------------------------------------------------------
# Parameter init (PyTorch nn.Linear default: U(-1/sqrt(fan_in), 1/sqrt(fan_in)))
# Returns list of (W (in,out), b (1,out)) so that math is x @ W + b.
# ----------------------------------------------------------------------------
def init_params(key, layer_sizes):
    params = []
    for i in range(len(layer_sizes) - 1):
        fan_in, fan_out = layer_sizes[i], layer_sizes[i + 1]
        key, wk, bk = jax.random.split(key, 3)
        bound = 1.0 / float(fan_in) ** 0.5
        w = jax.random.uniform(wk, (fan_in, fan_out), jnp.float32, -bound, bound)
        b = jax.random.uniform(bk, (1, fan_out), jnp.float32, -bound, bound)
        params.append((w, b))
    return params


def pack_params(params):
    """Pad/stack parameters once, off the hot path.

    * Input K is padded only to a sublane multiple (round_up(in_dim, 8)).
    * Hidden widths are padded to lane multiples (128); zero padding is exact
      through matmul + ReLU.
    * Hidden biases are stacked into one (H, Nmax_pad) slab (one DMA).
    * The last layer's weight is stored in (out_dim, Kpad) layout (nn.Linear's
      native layout) so the kernel emits a lane-dense (out_dim, tb) output.
    """
    hidden = params[:-1]
    w_last_raw, b_last_raw = params[-1]

    kp = _round_up(params[0][0].shape[0], SUBLANE)   # input K: sublane pad only
    hidden_ws, hidden_npads = [], []
    for (w, _) in hidden:
        K, N = w.shape
        np_ = _round_up(N, LANE)
        hidden_ws.append(jnp.zeros((kp, np_), jnp.float32).at[:K, :N].set(w))
        hidden_npads.append(np_)
        kp = np_                                     # next layer's K

    n_hidden = len(hidden)
    nmax = max(hidden_npads) if hidden_npads else LANE
    b_hidden = jnp.zeros((max(n_hidden, 1), nmax), jnp.float32)
    for i, (_, b) in enumerate(hidden):
        b_hidden = b_hidden.at[i, :b.shape[-1]].set(b.reshape(-1))

    K_last, out_dim = w_last_raw.shape
    w_last = jnp.zeros((out_dim, kp), jnp.float32).at[:, :K_last].set(w_last_raw.T)
    b_last = b_last_raw.reshape(out_dim, 1).astype(jnp.float32)

    return tuple(hidden_ws), b_hidden, w_last, b_last, tuple(hidden_npads)


# ----------------------------------------------------------------------------
# Forward pass: flatten + fused MLP pallas_call (single jit -> one dispatch;
# XLA fuses the pad / un-pad around the custom call).
# ----------------------------------------------------------------------------
@functools.partial(jax.jit,
                   static_argnames=("hidden_npads", "out_dim", "use_bf16"))
def neural_network_forward(x, hidden_ws, b_hidden, w_last, b_last, *,
                           hidden_npads, out_dim, use_bf16=False):
    B = x.shape[0]
    xf = x.reshape(B, -1).astype(jnp.float32)        # nn.Flatten
    K = xf.shape[1]
    n_hidden = len(hidden_ws)
    kpad0 = hidden_ws[0].shape[0] if n_hidden else w_last.shape[1]

    # --- batch tiling ------------------------------------------------------
    TB_CAP = 512                                     # big tiles amortize grid overhead
    b_pad = _round_up(B, SUBLANE)
    if b_pad > TB_CAP:
        tb = TB_CAP
    elif b_pad >= 2 * SUBLANE:
        tb = _round_up((b_pad + 1) // 2, SUBLANE)    # >=2 tiles -> both v7x TCs busy
    else:
        tb = b_pad
    b_grid = _round_up(b_pad, tb)
    num_tiles = b_grid // tb

    x_pad = jnp.zeros((b_grid, kpad0), jnp.float32).at[:B, :K].set(xf)

    # Activation tile moves with the grid; weights/biases are full-array
    # (block index 0 every step) so they stay VMEM-resident.
    in_specs = [pl.BlockSpec((tb, kpad0), lambda i: (i, 0))]
    for wp in hidden_ws:
        in_specs.append(pl.BlockSpec(wp.shape, lambda i: (0, 0)))
    in_specs.append(pl.BlockSpec(b_hidden.shape, lambda i: (0, 0)))
    in_specs.append(pl.BlockSpec(w_last.shape, lambda i: (0, 0)))
    in_specs.append(pl.BlockSpec(b_last.shape, lambda i: (0, 0)))
    # Lane-dense output: (num_tiles, out_dim, tb); no 128x column padding.
    out_spec = pl.BlockSpec((1, out_dim, tb), lambda i: (i, 0, 0))

    # Advisory cost estimate for XLA's scheduler.
    flops = 2 * b_grid * (sum(w.shape[0] * w.shape[1] for w in hidden_ws)
                          + w_last.shape[0] * w_last.shape[1])
    param_bytes = 4 * (sum(int(w.size) for w in hidden_ws) + int(b_hidden.size)
                       + int(w_last.size) + int(b_last.size))
    io_bytes = 4 * (int(x_pad.size) + num_tiles * out_dim * tb)
    cost = pl.CostEstimate(flops=int(flops), transcendentals=0,
                           bytes_accessed=int(param_bytes + io_bytes))

    # Tight VMEM budget: 2x for EVERY block (Pallas double-buffers inputs and
    # outputs even with a constant index_map) plus live-intermediate scratch,
    # then 1.5x headroom with a small floor.  No arbitrary cap (v7x: 64 MiB).
    max_np = max(hidden_npads) if hidden_npads else kpad0
    vmem_needed = (2 * 4 * (tb * kpad0 + out_dim * tb)   # activation tiles in/out
                   + 2 * param_bytes                     # resident params, 2x-buffered
                   + 2 * 4 * tb * max_np)                # widest live intermediates
    vmem_limit = int(max(vmem_needed * 3 // 2, 8 * 1024 * 1024))

    kernel = functools.partial(_fused_mlp_kernel, n_hidden=n_hidden,
                               hidden_npads=hidden_npads, use_bf16=use_bf16)
    out_t = pl.pallas_call(
        kernel,
        out_shape=jax.ShapeDtypeStruct((num_tiles, out_dim, tb), jnp.float32),
        grid=(num_tiles,),
        in_specs=in_specs,
        out_specs=out_spec,
        compiler_params=pltpu.CompilerParams(
            dimension_semantics=("parallel",),
            vmem_limit_bytes=vmem_limit,
        ),
        cost_estimate=cost,
    )(x_pad, *hidden_ws, b_hidden, w_last, b_last)

    # (num_tiles, out_dim, tb) -> (B, out_dim); batch padding stripped here.
    out = jnp.transpose(out_t, (0, 2, 1)).reshape(b_grid, out_dim)
    return out[:B]


if __name__ == "__main__":
    # Config matching the PyTorch module's constructor semantics.
    config = {
        "layer_number": 3,
        "l0": 32, "l1": 64, "l2": 32, "l3": 16, "l4": 16,
        "l5": 16, "l6": 16, "l7": 16, "l8": 16, "l9": 16,
    }
    in_dim, out_dim = 9, 1
    layer_cfg = [config[f"l{i}"] for i in range(10)]
    layer_sizes = [in_dim] + layer_cfg[: config["layer_number"]] + [out_dim]
    # -> [9, 32, 64, 32, 1]

    key = jax.random.PRNGKey(0)
    pkey, xkey = jax.random.split(key)
    params = init_params(pkey, layer_sizes)
    hidden_ws, b_hidden, w_last, b_last, hidden_npads = pack_params(params)

    # Input: (batch=8, 3, 3); nn.Flatten -> (8, 9) = (batch, in_dim).
    x = jax.random.normal(xkey, (8, 3, 3), jnp.float32)

    out = neural_network_forward(x, hidden_ws, b_hidden, w_last, b_last,
                                 hidden_npads=hidden_npads, out_dim=out_dim)
    jax.block_until_ready(out)
    assert out.shape == (8, out_dim), out.shape

    # Pure-JAX reference check of the fused kernel (f32 path).
    ref = x.reshape(8, -1)
    for i, (w, b) in enumerate(params):
        ref = ref @ w + b
        if i < len(params) - 1:
            ref = jnp.maximum(ref, 0.0)
    assert jnp.allclose(out, ref, atol=1e-4, rtol=1e-4), (
        float(jnp.max(jnp.abs(out - ref))))

    print("KERNEL_OK")
</pallas_src>

<mosaic_0001>
module attributes {stable_mosaic.version = 11 : i64} {
  func.func @_fused_mlp_kernel(%arg0: i32, %arg1: memref<8x16xf32, #tpu.memory_space<vmem>>, %arg2: memref<16x128xf32, #tpu.memory_space<vmem>>, %arg3: memref<128x128xf32, #tpu.memory_space<vmem>>, %arg4: memref<128x128xf32, #tpu.memory_space<vmem>>, %arg5: memref<3x128xf32, #tpu.memory_space<vmem>>, %arg6: memref<1x128xf32, #tpu.memory_space<vmem>>, %arg7: memref<1x1xf32, #tpu.memory_space<vmem>>, %arg8: memref<1x1x8xf32, #tpu.memory_space<vmem>>) attributes {dimension_semantics = [#tpu.dimension_semantics<parallel>], iteration_bounds = array<i64: 1>, scalar_prefetch = 0 : i64, scratch_operands = 0 : i64, tpu.core_type = #tpu.core_type<tc>, window_params = [{transform_indices = @transform_0, window_bounds = array<i64: 8, 16>}, {pipeline_mode = #tpu.pipeline_mode<synchronous>, transform_indices = @transform_1, window_bounds = array<i64: 16, 128>}, {pipeline_mode = #tpu.pipeline_mode<synchronous>, transform_indices = @transform_2, window_bounds = array<i64: 128, 128>}, {pipeline_mode = #tpu.pipeline_mode<synchronous>, transform_indices = @transform_3, window_bounds = array<i64: 128, 128>}, {pipeline_mode = #tpu.pipeline_mode<synchronous>, transform_indices = @transform_4, window_bounds = array<i64: 3, 128>}, {pipeline_mode = #tpu.pipeline_mode<synchronous>, transform_indices = @transform_5, window_bounds = array<i64: 1, 128>}, {pipeline_mode = #tpu.pipeline_mode<synchronous>, transform_indices = @transform_6, window_bounds = array<i64: 1, 1>}, {transform_indices = @transform_7, window_bounds = array<i64: 1, 1, 8>}]} {
    %c0 = arith.constant 0 : index
    %c0_0 = arith.constant 0 : index
    %0 = vector.load %arg1[%c0, %c0_0] : memref<8x16xf32, #tpu.memory_space<vmem>>, vector<8x16xf32>
    %c0_1 = arith.constant 0 : index
    %c0_2 = arith.constant 0 : index
    %1 = vector.load %arg2[%c0_1, %c0_2] : memref<16x128xf32, #tpu.memory_space<vmem>>, vector<16x128xf32>
    %c0_3 = arith.constant 0 : index
    %c0_4 = arith.constant 0 : index
    %2 = vector.load %arg5[%c0_3, %c0_4] : memref<3x128xf32, #tpu.memory_space<vmem>>, vector<1x128xf32>
    %cst = arith.constant dense<0.000000e+00> : vector<8x128xf32>
    %3 = tpu.matmul %0, %1, %cst {dimension_numbers = #tpu.dot_dimension_numbers<[1], [0], [0], [1], [0, 0, 1, 1], [], []>} : vector<8x16xf32>, vector<16x128xf32>, vector<8x128xf32> -> vector<8x128xf32>
    %4 = vector.broadcast %2 : vector<1x128xf32> to vector<8x128xf32>
    %5 = arith.addf %3, %4 : vector<8x128xf32>
    %cst_5 = arith.constant 0.000000e+00 : f32
    %6 = vector.broadcast %cst_5 : f32 to vector<8x128xf32>
    %7 = arith.maximumf %5, %6 : vector<8x128xf32>
    %c0_6 = arith.constant 0 : index
    %c0_7 = arith.constant 0 : index
    %8 = vector.load %arg3[%c0_6, %c0_7] : memref<128x128xf32, #tpu.memory_space<vmem>>, vector<128x128xf32>
    %c1 = arith.constant 1 : index
    %c0_8 = arith.constant 0 : index
    %9 = vector.load %arg5[%c1, %c0_8] : memref<3x128xf32, #tpu.memory_space<vmem>>, vector<1x128xf32>
    %cst_9 = arith.constant dense<0.000000e+00> : vector<8x128xf32>
    %10 = tpu.matmul %7, %8, %cst_9 {dimension_numbers = #tpu.dot_dimension_numbers<[1], [0], [0], [1], [0, 0, 1, 1], [], []>} : vector<8x128xf32>, vector<128x128xf32>, vector<8x128xf32> -> vector<8x128xf32>
    %11 = vector.broadcast %9 : vector<1x128xf32> to vector<8x128xf32>
    %12 = arith.addf %10, %11 : vector<8x128xf32>
    %cst_10 = arith.constant 0.000000e+00 : f32
    %13 = vector.broadcast %cst_10 : f32 to vector<8x128xf32>
    %14 = arith.maximumf %12, %13 : vector<8x128xf32>
    %c0_11 = arith.constant 0 : index
    %c0_12 = arith.constant 0 : index
    %15 = vector.load %arg4[%c0_11, %c0_12] : memref<128x128xf32, #tpu.memory_space<vmem>>, vector<128x128xf32>
    %c2 = arith.constant 2 : index
    %c0_13 = arith.constant 0 : index
    %16 = vector.load %arg5[%c2, %c0_13] : memref<3x128xf32, #tpu.memory_space<vmem>>, vector<1x128xf32>
    %cst_14 = arith.constant dense<0.000000e+00> : vector<8x128xf32>
    %17 = tpu.matmul %14, %15, %cst_14 {dimension_numbers = #tpu.dot_dimension_numbers<[1], [0], [0], [1], [0, 0, 1, 1], [], []>} : vector<8x128xf32>, vector<128x128xf32>, vector<8x128xf32> -> vector<8x128xf32>
    %18 = vector.broadcast %16 : vector<1x128xf32> to vector<8x128xf32>
    %19 = arith.addf %17, %18 : vector<8x128xf32>
    %cst_15 = arith.constant 0.000000e+00 : f32
    %20 = vector.broadcast %cst_15 : f32 to vector<8x128xf32>
    %21 = arith.maximumf %19, %20 : vector<8x128xf32>
    %c0_16 = arith.constant 0 : index
    %c0_17 = arith.constant 0 : index
    %22 = vector.load %arg6[%c0_16, %c0_17] : memref<1x128xf32, #tpu.memory_space<vmem>>, vector<1x128xf32>
    %cst_18 = arith.constant dense<0.000000e+00> : vector<1x8xf32>
    %23 = tpu.matmul %22, %21, %cst_18 {dimension_numbers = #tpu.dot_dimension_numbers<[1], [1], [0], [0], [0, 0, 1, 0], [], []>} : vector<1x128xf32>, vector<8x128xf32>, vector<1x8xf32> -> vector<1x8xf32>
    %c0_19 = arith.constant 0 : index
    %c0_20 = arith.constant 0 : index
    %24 = vector.load %arg7[%c0_19, %c0_20] : memref<1x1xf32, #tpu.memory_space<vmem>>, vector<1x1xf32>
    %25 = vector.broadcast %24 : vector<1x1xf32> to vector<1x8xf32>
    %26 = arith.addf %23, %25 : vector<1x8xf32>
    %27 = vector.shape_cast %26 : vector<1x8xf32> to vector<1x1x8xf32>
    %c0_21 = arith.constant 0 : index
    %c0_22 = arith.constant 0 : index
    %c0_23 = arith.constant 0 : index
    %28 = vector.load %arg8[%c0_21, %c0_22, %c0_23] : memref<1x1x8xf32, #tpu.memory_space<vmem>>, vector<1x1x8xf32>
    tpu.vector_store %arg8[%c0_21, %c0_22, %c0_23], %27 {strides = array<i32>} : memref<1x1x8xf32, #tpu.memory_space<vmem>>, vector<1x1x8xf32>,
    return
  }
  func.func @transform_0(%arg0: i32) -> (i32, i32) {
    %c0_i32 = arith.constant 0 : i32
    %c0_i32_0 = arith.constant 0 : i32
    return %arg0, %c0_i32 : i32, i32
  }
  func.func @transform_1(%arg0: i32) -> (i32, i32) {
    %c0_i32 = arith.constant 0 : i32
    %c0_i32_0 = arith.constant 0 : i32
    %c0_i32_1 = arith.constant 0 : i32
    return %c0_i32, %c0_i32_0 : i32, i32
  }
  func.func @transform_2(%arg0: i32) -> (i32, i32) {
    %c0_i32 = arith.constant 0 : i32
    %c0_i32_0 = arith.constant 0 : i32
    %c0_i32_1 = arith.constant 0 : i32
    return %c0_i32, %c0_i32_0 : i32, i32
  }
  func.func @transform_3(%arg0: i32) -> (i32, i32) {
    %c0_i32 = arith.constant 0 : i32
    %c0_i32_0 = arith.constant 0 : i32
    %c0_i32_1 = arith.constant 0 : i32
    return %c0_i32, %c0_i32_0 : i32, i32
  }
  func.func @transform_4(%arg0: i32) -> (i32, i32) {
    %c0_i32 = arith.constant 0 : i32
    %c0_i32_0 = arith.constant 0 : i32
    %c0_i32_1 = arith.constant 0 : i32
    return %c0_i32, %c0_i32_0 : i32, i32
  }
  func.func @transform_5(%arg0: i32) -> (i32, i32) {
    %c0_i32 = arith.constant 0 : i32
    %c0_i32_0 = arith.constant 0 : i32
    %c0_i32_1 = arith.constant 0 : i32
    return %c0_i32, %c0_i32_0 : i32, i32
  }
  func.func @transform_6(%arg0: i32) -> (i32, i32) {
    %c0_i32 = arith.constant 0 : i32
    %c0_i32_0 = arith.constant 0 : i32
    %c0_i32_1 = arith.constant 0 : i32
    return %c0_i32, %c0_i32_0 : i32, i32
  }
  func.func @transform_7(%arg0: i32) -> (i32, i32, i32) {
    %c0_i32 = arith.constant 0 : i32
    %c0_i32_0 = arith.constant 0 : i32
    %c0_i32_1 = arith.constant 0 : i32
    return %arg0, %c0_i32, %c0_i32_0 : i32, i32, i32
  }
}

</mosaic_0001>

<llo_original>
// kernel: neural_network_forward.1
$region0: #{neural_network_forward.1}
  #allocation0 [shape = 'u32[]', space=smem, size = 0x4, offset = 0x4, fixed_abs, tag = 'smem constant byte address 0x4 - core index']
  #allocation1 [shape = 'u32[144,128]{1,0:T(1,128)}', space=vmem, size = 0x12000, scoped, tag = 'internal scratch']
  #allocation2 [shape = 'f32[1,1]{1,0:T(1,128)S(1)}', space=vmem, size = 0x200, scoped, tag = 'scoped memory for neural_network_forward.1']
  %s0 = inlined_call_operand.vmem [shape: f32[8,16], index: 0, kind: input, shape index: {}]
  %s1 = inlined_call_operand.vmem [shape: f32[16,128], index: 1, kind: input, shape index: {}]
  %s2 = inlined_call_operand.hbm [shape: f32[128,128], index: 2, kind: input, shape index: {}]
  %s3 = inlined_call_operand.hbm [shape: f32[128,128], index: 3, kind: input, shape index: {}]
  %s4 = inlined_call_operand.vmem [shape: f32[3,128], index: 4, kind: input, shape index: {}]
  %s5 = inlined_call_operand.vmem [shape: f32[1,128], index: 5, kind: input, shape index: {}]
  %s6 = inlined_call_operand.<no memory space> [shape: f32[1,1], index: 6, kind: input, shape index: {}]
  %s7 = inlined_call_operand.hbm [shape: f32[1,1,8], index: 7, kind: output, shape index: {}]
  %s8 = sld [smem:[#allocation0]]
  $region46: #{neural_network_forward.1} parent=0
    _
  %s10 = ssub.s32 1, %s8
  %s11 = scalar_select 0, %s10, %s8
  %v12 = vstv %s6
  %13 = vst [vmem:[#allocation2] sm:$0x1] %v12
  $region1: #{neural_network_forward.1} parent=0
    #allocation3 [shape = 'u8[65536]{0}', space=vmem, size = 0x10000, scoped, tag = 'input window, operand 2, single buffered']
    #allocation4 [shape = 's32[1]{0}', space=sflag, size = 0x4, scoped, tag = 'scoped memory for neural_network_forward.1']
    #allocation5 [shape = 's32[1]{0}', space=sflag, size = 0x4, scoped, tag = 'scoped memory for neural_network_forward.1']
    #allocation6 [shape = 'u8[65536]{0}', space=vmem, size = 0x10000, scoped, tag = 'input window, operand 3, single buffered']
    #allocation7 [shape = 's32[1]{0}', space=sflag, size = 0x4, scoped, tag = 'scoped memory for neural_network_forward.1']
    #allocation8 [shape = 'u8[512]{0}', space=vmem, size = 0x400, scoped, tag = 'output window, operand 0, single buffered']
    %14 = vsyncpa [#allocation4], 0
    %15 = vsyncpa [#allocation7], 0
    %16 = vsyncpa [#allocation5], 0
    // Predicated region
    $region2: #{neural_network_forward.1} parent=1 // pred_check
      _
    $region3: #{neural_network_forward.1} parent=1 // pred_check_branch
      %18 = sbr.rel (0) target = $region5
    $region4: #{neural_network_forward.1} parent=1 // pred_region
      _
    $region5: #{neural_network_forward.1} parent=1 // pred_fallthru
      _
    // Predicated region
    $region6: #{neural_network_forward.1} parent=1 // pred_check
      _
    $region7: #{neural_network_forward.1} parent=1 // pred_check_branch
      %20 = sbr.rel (0) target = $region9
    $region8: #{neural_network_forward.1} parent=1 // pred_region
      _
    $region9: #{neural_network_forward.1} parent=1 // pred_fallthru
      _
    // Predicated region
    $region10: #{neural_network_forward.1} parent=1 // pred_check
      _
    $region11: #{neural_network_forward.1} parent=1 // pred_check_branch
      %22 = sbr.rel (0) target = $region13
    $region12: #{neural_network_forward.1} parent=1 // pred_region
      %s24 = ssub.s32 2048, 2048
      %25 = vsyncadd [#allocation4], %s24
      %s26 = sshll.u32 [#allocation3], 4
      %s27 = int_to_ptr.vmem [resolvable:$true] %s26
      %32 = dma.hbm_to_vmem [thread:$0]  %s2, 2048, %s27, [#allocation4], 128, 128, 8
    $region13: #{neural_network_forward.1} parent=1 // pred_fallthru
      _
    // Predicated region
    $region14: #{neural_network_forward.1} parent=1 // pred_check
      _
    $region15: #{neural_network_forward.1} parent=1 // pred_check_branch
      %34 = sbr.rel (0) target = $region17
    $region16: #{neural_network_forward.1} parent=1 // pred_region
      %s36 = ssub.s32 2048, 2048
      %37 = vsyncadd [#allocation7], %s36
      %s38 = sshll.u32 [#allocation6], 4
      %s39 = int_to_ptr.vmem [resolvable:$true] %s38
      %44 = dma.hbm_to_vmem [thread:$0]  %s3, 2048, %s39, [#allocation7], 128, 128, 8
    $region17: #{neural_network_forward.1} parent=1 // pred_fallthru
      _
    // Predicated region
    $region18: #{neural_network_forward.1} parent=1 // pred_check
      _
    $region19: #{neural_network_forward.1} parent=1 // pred_check_branch
      %46 = sbr.rel (0) target = $region21
    $region20: #{neural_network_forward.1} parent=1 // pred_region
      _
    $region21: #{neural_network_forward.1} parent=1 // pred_fallthru
      _
    // Predicated region
    $region22: #{neural_network_forward.1} parent=1 // pred_check
      _
    $region23: #{neural_network_forward.1} parent=1 // pred_check_branch
      %48 = sbr.rel (0) target = $region25
    $region24: #{neural_network_forward.1} parent=1 // pred_region
      _
    $region25: #{neural_network_forward.1} parent=1 // pred_fallthru
      _
    // Predicated region
    $region26: #{neural_network_forward.1} parent=1 // pred_check
      _
    $region27: #{neural_network_forward.1} parent=1 // pred_check_branch
      %50 = sbr.rel (0) target = $region29
    $region28: #{neural_network_forward.1} parent=1 // pred_region
      _
    $region29: #{neural_network_forward.1} parent=1 // pred_fallthru
      _
    // Predicated region
    $region30: #{neural_network_forward.1} parent=1 // pred_check
      _
    $region31: #{neural_network_forward.1} parent=1 // pred_check_branch
      %52 = sbr.rel (0) target = $region33
    $region32: #{neural_network_forward.1} parent=1 // pred_region
      %53 = dma.done [#allocation4], 2048
    $region33: #{neural_network_forward.1} parent=1 // pred_fallthru
      _
    // Predicated region
    $region34: #{neural_network_forward.1} parent=1 // pred_check
      _
    $region35: #{neural_network_forward.1} parent=1 // pred_check_branch
      %55 = sbr.rel (0) target = $region37
    $region36: #{neural_network_forward.1} parent=1 // pred_region
      %56 = dma.done [#allocation7], 2048
    $region37: #{neural_network_forward.1} parent=1 // pred_fallthru
      _
    %v57 = vld [vmem:[%s0] sm:$0xff]
    %v58 = vld [vmem:[%s1] sm:$0xff]
    %v59 = vld [vmem:[%s1 + $0x8] sm:$0xff]
    %v60 = vld [vmem:[%s4] sm:$0x1]
    %v61 = vlaneseq
    %v62 = vshrl.u32 %v61, 7
    %v63 = vsub.s32 0, %v62
    %v64 = vrot.slane %v60, %v63
    %vm65 = vcmask 130048
    %v67 = vsel %vm65, %v57, 0
    %69 = vmatprep.subr.mxu0 0.0
    %70 = vmatpush1.msra.mxu0 %v58
    %71 = vmatprep.subr.mxu0 0.0
    %72 = vmatpush1.msra.mxu0 %v59
    %73 = vmatprep.subr.mxu0 0.0
    %74 = vmatpush1.msra.mxu0 0.0
    %75 = vmatprep.subr.mxu0 0.0
    %76 = vmatpush1.msra.mxu0 0.0
    %77 = vmatprep.subr.mxu0 0.0
    %78 = vmatpush1.msra.mxu0 0.0
    %79 = vmatprep.subr.mxu0 0.0
    %80 = vmatpush1.msra.mxu0 0.0
    %81 = vmatprep.subr.mxu0 0.0
    %82 = vmatpush1.msra.mxu0 0.0
    %83 = vmatprep.subr.mxu0 0.0
    %84 = vmatpush1.msra.mxu0 0.0
    %85 = vmatprep.subr.mxu0 0.0
    %86 = vmatpush1.msra.mxu0 0.0
    %87 = vmatprep.subr.mxu0 0.0
    %88 = vmatpush1.msra.mxu0 0.0
    %89 = vmatprep.subr.mxu0 0.0
    %90 = vmatpush1.msra.mxu0 0.0
    %91 = vmatprep.subr.mxu0 0.0
    %92 = vmatpush1.msra.mxu0 0.0
    %93 = vmatprep.subr.mxu0 0.0
    %94 = vmatpush1.msra.mxu0 0.0
    %95 = vmatprep.subr.mxu0 0.0
    %96 = vmatpush1.msra.mxu0 0.0
    %97 = vmatprep.subr.mxu0 0.0
    %98 = vmatpush1.msra.mxu0 0.0
    %99 = vmatprep.subr.mxu0 0.0
    %100 = vmatpush1.msra.mxu0 0.0
    %101 = vmatprep.subr.mxu0 0.0
    %102 = vmatpush1.msra.mxu0 0.0
    %103 = vmatprep.subr.mxu0 0.0
    %104 = vmatpush1.msra.mxu0 0.0
    %105 = vmatprep.subr.mxu0 0.0
    %106 = vmatpush1.msra.mxu0 0.0
    %107 = vmatprep.subr.mxu0 0.0
    %108 = vmatpush1.msra.mxu0 0.0
    %109 = vmatprep.subr.mxu0 0.0
    %110 = vmatpush1.msra.mxu0 0.0
    %111 = vmatprep.subr.mxu0 0.0
    %112 = vmatpush1.msra.mxu0 0.0
    %113 = vmatprep.subr.mxu0 0.0
    %114 = vmatpush1.msra.mxu0 0.0
    %115 = vmatprep.subr.mxu0 0.0
    %116 = vmatpush1.msra.mxu0 0.0
    %117 = vmatprep.subr.mxu0 0.0
    %118 = vmatpush1.msra.mxu0 0.0
    %119 = vmatprep.subr.mxu0 0.0
    %120 = vmatpush1.msra.mxu0 0.0
    %121 = vmatprep.subr.mxu0 0.0
    %122 = vmatpush1.msra.mxu0 0.0
    %123 = vmatprep.subr.mxu0 0.0
    %124 = vmatpush1.msra.mxu0 0.0
    %125 = vmatprep.subr.mxu0 0.0
    %126 = vmatpush1.msra.mxu0 0.0
    %127 = vmatprep.subr.mxu0 0.0
    %128 = vmatpush1.msra.mxu0 0.0
    %129 = vmatprep.subr.mxu0 0.0
    %130 = vmatpush1.msra.mxu0 0.0
    %131 = vmatprep.subr.mxu0 0.0
    %132 = vmatpush1.msra.mxu0 0.0
    %133 = vmatprep.mubr.f32.mxu0 0.0
    %134 = vmatmul.mubr.f32.gmra.mrb[0].mxu0 %v67
    %v135 = vpop.f32.mrb[0].mxu0
    %v136 = vadd.f32 %v64, %v135
    %v137 = vpop.f32.mrb[0].mxu0
    %138 = vdwg.mxu0
    %v139 = vmax.f32 %v136, 0.0
    %v140 = vld [vmem:[#allocation3] sm:$0xff]
    %v141 = vld [vmem:[#allocation3 + $0x8] sm:$0xff]
    %v142 = vld [vmem:[#allocation3 + $0x10] sm:$0xff]
    %v143 = vld [vmem:[#allocation3 + $0x18] sm:$0xff]
    %v144 = vld [vmem:[#allocation3 + $0x20] sm:$0xff]
    %v145 = vld [vmem:[#allocation3 + $0x28] sm:$0xff]
    %v146 = vld [vmem:[#allocation3 + $0x30] sm:$0xff]
    %v147 = vld [vmem:[#allocation3 + $0x38] sm:$0xff]
    %v148 = vld [vmem:[#allocation3 + $0x40] sm:$0xff]
    %v149 = vld [vmem:[#allocation3 + $0x48] sm:$0xff]
    %v150 = vld [vmem:[#allocation3 + $0x50] sm:$0xff]
    %v151 = vld [vmem:[#allocation3 + $0x58] sm:$0xff]
    %v152 = vld [vmem:[#allocation3 + $0x60] sm:$0xff]
    %v153 = vld [vmem:[#allocation3 + $0x68] sm:$0xff]
    %v154 = vld [vmem:[#allocation3 + $0x70] sm:$0xff]
    %v155 = vld [vmem:[#allocation3 + $0x78] sm:$0xff]
    %v156 = vld [vmem:[%s4 + $0x1] sm:$0x1]
    %v157 = vlaneseq
    %v158 = vshrl.u32 %v157, 7
    %v159 = vsub.s32 0, %v158
    %v160 = vrot.slane %v156, %v159
    %161 = vmatprep.subr.mxu0 0.0
    %162 = vmatpush1.msra.mxu0 %v140
    %163 = vmatprep.subr.mxu0 0.0
    %164 = vmatpush1.msra.mxu0 %v141
    %165 = vmatprep.subr.mxu0 0.0
    %166 = vmatpush1.msra.mxu0 %v142
    %167 = vmatprep.subr.mxu0 0.0
    %168 = vmatpush1.msra.mxu0 %v143
    %169 = vmatprep.subr.mxu0 0.0
    %170 = vmatpush1.msra.mxu0 %v144
    %171 = vmatprep.subr.mxu0 0.0
    %172 = vmatpush1.msra.mxu0 %v145
    %173 = vmatprep.subr.mxu0 0.0
    %174 = vmatpush1.msra.mxu0 %v146
    %175 = vmatprep.subr.mxu0 0.0
    %176 = vmatpush1.msra.mxu0 %v147
    %177 = vmatprep.subr.mxu0 0.0
    %178 = vmatpush1.msra.mxu0 %v148
    %179 = vmatprep.subr.mxu0 0.0
    %180 = vmatpush1.msra.mxu0 %v149
    %181 = vmatprep.subr.mxu0 0.0
    %182 = vmatpush1.msra.mxu0 %v150
    %183 = vmatprep.subr.mxu0 0.0
    %184 = vmatpush1.msra.mxu0 %v151
    %185 = vmatprep.subr.mxu0 0.0
    %186 = vmatpush1.msra.mxu0 %v152
    %187 = vmatprep.subr.mxu0 0.0
    %188 = vmatpush1.msra.mxu0 %v153
    %189 = vmatprep.subr.mxu0 0.0
    %190 = vmatpush1.msra.mxu0 %v154
    %191 = vmatprep.subr.mxu0 0.0
    %192 = vmatpush1.msra.mxu0 %v155
    %193 = vmatprep.subr.mxu0 0.0
    %194 = vmatpush1.msra.mxu0 0.0
    %195 = vmatprep.subr.mxu0 0.0
    %196 = vmatpush1.msra.mxu0 0.0
    %197 = vmatprep.subr.mxu0 0.0
    %198 = vmatpush1.msra.mxu0 0.0
    %199 = vmatprep.subr.mxu0 0.0
    %200 = vmatpush1.msra.mxu0 0.0
    %201 = vmatprep.subr.mxu0 0.0
    %202 = vmatpush1.msra.mxu0 0.0
    %203 = vmatprep.subr.mxu0 0.0
    %204 = vmatpush1.msra.mxu0 0.0
    %205 = vmatprep.subr.mxu0 0.0
    %206 = vmatpush1.msra.mxu0 0.0
    %207 = vmatprep.subr.mxu0 0.0
    %208 = vmatpush1.msra.mxu0 0.0
    %209 = vmatprep.subr.mxu0 0.0
    %210 = vmatpush1.msra.mxu0 0.0
    %211 = vmatprep.subr.mxu0 0.0
    %212 = vmatpush1.msra.mxu0 0.0
    %213 = vmatprep.subr.mxu0 0.0
    %214 = vmatpush1.msra.mxu0 0.0
    %215 = vmatprep.subr.mxu0 0.0
    %216 = vmatpush1.msra.mxu0 0.0
    %217 = vmatprep.subr.mxu0 0.0
    %218 = vmatpush1.msra.mxu0 0.0
    %219 = vmatprep.subr.mxu0 0.0
    %220 = vmatpush1.msra.mxu0 0.0
    %221 = vmatprep.subr.mxu0 0.0
    %222 = vmatpush1.msra.mxu0 0.0
    %223 = vmatprep.subr.mxu0 0.0
    %224 = vmatpush1.msra.mxu0 0.0
    %225 = vmatprep.mubr.f32.mxu0 0.0
    %226 = vmatmul.mubr.f32.gmra.mrb[0].mxu0 %v139
    %v227 = vpop.f32.mrb[0].mxu0
    %v228 = vadd.f32 %v160, %v227
    %v229 = vpop.f32.mrb[0].mxu0
    %230 = vdwg.mxu0
    %v231 = vmax.f32 %v228, 0.0
    %v232 = vld [vmem:[#allocation6] sm:$0xff]
    %v233 = vld [vmem:[#allocation6 + $0x8] sm:$0xff]
    %v234 = vld [vmem:[#allocation6 + $0x10] sm:$0xff]
    %v235 = vld [vmem:[#allocation6 + $0x18] sm:$0xff]
    %v236 = vld [vmem:[#allocation6 + $0x20] sm:$0xff]
    %v237 = vld [vmem:[#allocation6 + $0x28] sm:$0xff]
    %v238 = vld [vmem:[#allocation6 + $0x30] sm:$0xff]
    %v239 = vld [vmem:[#allocation6 + $0x38] sm:$0xff]
    %v240 = vld [vmem:[#allocation6 + $0x40] sm:$0xff]
    %v241 = vld [vmem:[#allocation6 + $0x48] sm:$0xff]
    %v242 = vld [vmem:[#allocation6 + $0x50] sm:$0xff]
    %v243 = vld [vmem:[#allocation6 + $0x58] sm:$0xff]
    %v244 = vld [vmem:[#allocation6 + $0x60] sm:$0xff]
    %v245 = vld [vmem:[#allocation6 + $0x68] sm:$0xff]
    %v246 = vld [vmem:[#allocation6 + $0x70] sm:$0xff]
    %v247 = vld [vmem:[#allocation6 + $0x78] sm:$0xff]
    %v248 = vld [vmem:[%s4 + $0x2] sm:$0x1]
    %v249 = vlaneseq
    %v250 = vshrl.u32 %v249, 7
    %v251 = vsub.s32 0, %v250
    %v252 = vrot.slane %v248, %v251
    %253 = vmatprep.subr.mxu0 0.0
    %254 = vmatpush1.msra.mxu0 %v232
    %255 = vmatprep.subr.mxu0 0.0
    %256 = vmatpush1.msra.mxu0 %v233
    %257 = vmatprep.subr.mxu0 0.0
    %258 = vmatpush1.msra.mxu0 %v234
    %259 = vmatprep.subr.mxu0 0.0
    %260 = vmatpush1.msra.mxu0 %v235
    %261 = vmatprep.subr.mxu0 0.0
    %262 = vmatpush1.msra.mxu0 %v236
    %263 = vmatprep.subr.mxu0 0.0
    %264 = vmatpush1.msra.mxu0 %v237
    %265 = vmatprep.subr.mxu0 0.0
    %266 = vmatpush1.msra.mxu0 %v238
    %267 = vmatprep.subr.mxu0 0.0
    %268 = vmatpush1.msra.mxu0 %v239
    %269 = vmatprep.subr.mxu0 0.0
    %270 = vmatpush1.msra.mxu0 %v240
    %271 = vmatprep.subr.mxu0 0.0
    %272 = vmatpush1.msra.mxu0 %v241
    %273 = vmatprep.subr.mxu0 0.0
    %274 = vmatpush1.msra.mxu0 %v242
    %275 = vmatprep.subr.mxu0 0.0
    %276 = vmatpush1.msra.mxu0 %v243
    %277 = vmatprep.subr.mxu0 0.0
    %278 = vmatpush1.msra.mxu0 %v244
    %279 = vmatprep.subr.mxu0 0.0
    %280 = vmatpush1.msra.mxu0 %v245
    %281 = vmatprep.subr.mxu0 0.0
    %282 = vmatpush1.msra.mxu0 %v246
    %283 = vmatprep.subr.mxu0 0.0
    %284 = vmatpush1.msra.mxu0 %v247
    %285 = vmatprep.subr.mxu0 0.0
    %286 = vmatpush1.msra.mxu0 0.0
    %287 = vmatprep.subr.mxu0 0.0
    %288 = vmatpush1.msra.mxu0 0.0
    %289 = vmatprep.subr.mxu0 0.0
    %290 = vmatpush1.msra.mxu0 0.0
    %291 = vmatprep.subr.mxu0 0.0
    %292 = vmatpush1.msra.mxu0 0.0
    %293 = vmatprep.subr.mxu0 0.0
    %294 = vmatpush1.msra.mxu0 0.0
    %295 = vmatprep.subr.mxu0 0.0
    %296 = vmatpush1.msra.mxu0 0.0
    %297 = vmatprep.subr.mxu0 0.0
    %298 = vmatpush1.msra.mxu0 0.0
    %299 = vmatprep.subr.mxu0 0.0
    %300 = vmatpush1.msra.mxu0 0.0
    %301 = vmatprep.subr.mxu0 0.0
    %302 = vmatpush1.msra.mxu0 0.0
    %303 = vmatprep.subr.mxu0 0.0
    %304 = vmatpush1.msra.mxu0 0.0
    %305 = vmatprep.subr.mxu0 0.0
    %306 = vmatpush1.msra.mxu0 0.0
    %307 = vmatprep.subr.mxu0 0.0
    %308 = vmatpush1.msra.mxu0 0.0
    %309 = vmatprep.subr.mxu0 0.0
    %310 = vmatpush1.msra.mxu0 0.0
    %311 = vmatprep.subr.mxu0 0.0
    %312 = vmatpush1.msra.mxu0 0.0
    %313 = vmatprep.subr.mxu0 0.0
    %314 = vmatpush1.msra.mxu0 0.0
    %315 = vmatprep.subr.mxu0 0.0
    %316 = vmatpush1.msra.mxu0 0.0
    %317 = vmatprep.mubr.f32.mxu0 0.0
    %318 = vmatmul.mubr.f32.gmra.mrb[0].mxu0 %v231
    %v319 = vpop.f32.mrb[0].mxu0
    %v320 = vadd.f32 %v252, %v319
    %v321 = vpop.f32.mrb[0].mxu0
    %322 = vdwg.mxu0
    %v323 = vmax.f32 %v320, 0.0
    %v324 = vld [vmem:[%s5] sm:$0x1]
    %v325 = vld [vmem:[#allocation2] sm:$0x1]
    %327 = vset.pattern.permute.xlu0 0
    %328 = vperm.xlu0 %327, %v325
    %v329 = vpop.permute.xlu0 %328
    %v331 = vlaneseq
    %v332 = vshrl.u32 %v331, 7
    %v333 = vsub.s32 0, %v332
    %v334 = vrot.slane %v329, %v333
    %335 = vmatprep.subr.mxu0 0.0
    %336 = vmatpush1.xpose.msra.mxu0 %v323
    %337 = vmatprep.subr.mxu0 0.0
    %338 = vmatpush1.xpose.msra.mxu0 0.0
    %339 = vmatprep.subr.mxu0 0.0
    %340 = vmatpush1.xpose.msra.mxu0 0.0
    %341 = vmatprep.subr.mxu0 0.0
    %342 = vmatpush1.xpose.msra.mxu0 0.0
    %343 = vmatprep.subr.mxu0 0.0
    %344 = vmatpush1.xpose.msra.mxu0 0.0
    %345 = vmatprep.subr.mxu0 0.0
    %346 = vmatpush1.xpose.msra.mxu0 0.0
    %347 = vmatprep.subr.mxu0 0.0
    %348 = vmatpush1.xpose.msra.mxu0 0.0
    %349 = vmatprep.subr.mxu0 0.0
    %350 = vmatpush1.xpose.msra.mxu0 0.0
    %351 = vmatprep.subr.mxu0 0.0
    %352 = vmatpush1.xpose.msra.mxu0 0.0
    %353 = vmatprep.subr.mxu0 0.0
    %354 = vmatpush1.xpose.msra.mxu0 0.0
    %355 = vmatprep.subr.mxu0 0.0
    %356 = vmatpush1.xpose.msra.mxu0 0.0
    %357 = vmatprep.subr.mxu0 0.0
    %358 = vmatpush1.xpose.msra.mxu0 0.0
    %359 = vmatprep.subr.mxu0 0.0
    %360 = vmatpush1.xpose.msra.mxu0 0.0
    %361 = vmatprep.subr.mxu0 0.0
    %362 = vmatpush1.xpose.msra.mxu0 0.0
    %363 = vmatprep.subr.mxu0 0.0
    %364 = vmatpush1.xpose.msra.mxu0 0.0
    %365 = vmatprep.subr.mxu0 0.0
    %366 = vmatpush1.xpose.msra.mxu0 0.0
    %367 = vmatprep.subr.mxu0 0.0
    %368 = vmatpush1.xpose.msra.mxu0 0.0
    %369 = vmatprep.subr.mxu0 0.0
    %370 = vmatpush1.xpose.msra.mxu0 0.0
    %371 = vmatprep.subr.mxu0 0.0
    %372 = vmatpush1.xpose.msra.mxu0 0.0
    %373 = vmatprep.subr.mxu0 0.0
    %374 = vmatpush1.xpose.msra.mxu0 0.0
    %375 = vmatprep.subr.mxu0 0.0
    %376 = vmatpush1.xpose.msra.mxu0 0.0
    %377 = vmatprep.subr.mxu0 0.0
    %378 = vmatpush1.xpose.msra.mxu0 0.0
    %379 = vmatprep.subr.mxu0 0.0
    %380 = vmatpush1.xpose.msra.mxu0 0.0
    %381 = vmatprep.subr.mxu0 0.0
    %382 = vmatpush1.xpose.msra.mxu0 0.0
    %383 = vmatprep.subr.mxu0 0.0
    %384 = vmatpush1.xpose.msra.mxu0 0.0
    %385 = vmatprep.subr.mxu0 0.0
    %386 = vmatpush1.xpose.msra.mxu0 0.0
    %387 = vmatprep.subr.mxu0 0.0
    %388 = vmatpush1.xpose.msra.mxu0 0.0
    %389 = vmatprep.subr.mxu0 0.0
    %390 = vmatpush1.xpose.msra.mxu0 0.0
    %391 = vmatprep.subr.mxu0 0.0
    %392 = vmatpush1.xpose.msra.mxu0 0.0
    %393 = vmatprep.subr.mxu0 0.0
    %394 = vmatpush1.xpose.msra.mxu0 0.0
    %395 = vmatprep.subr.mxu0 0.0
    %396 = vmatpush1.xpose.msra.mxu0 0.0
    %397 = vmatprep.subr.mxu0 0.0
    %398 = vmatpush1.xpose.msra.mxu0 0.0
    %399 = vmatprep.mubr.f32.mxu0 0.0
    %400 = vmatmul.mubr.f32.gmra.mrb[0].mxu0 %v324
    %v401 = vpop.f32.mrb[0].mxu0
    %v402 = vadd.f32 %v334, %v401
    %v403 = vpop.f32.mrb[0].mxu0
    %404 = vdwg.mxu0
    %vm405 = vcmask 57344
    %406 = vst.msk [vmem:[#allocation8] sm:$0x1] %vm405, %v402
    // Predicated region
    $region38: #{neural_network_forward.1} parent=1 // pred_check
      _
    $region39: #{neural_network_forward.1} parent=1 // pred_check_branch
      %408 = sbr.rel (0) target = $region41
    $region40: #{neural_network_forward.1} parent=1 // pred_region
      %s410 = ssub.s32 16, 16
      %411 = vsyncadd [#allocation5], %s410
      %s413 = sshll.u32 [#allocation8], 4
      %s414 = int_to_ptr.vmem [resolvable:$true] %s413
      %416 = dma.vmem_to_hbm [thread:$0]  %s414, 16, %s7, [#allocation5]
    $region41: #{neural_network_forward.1} parent=1 // pred_fallthru
      _
    // Predicated region
    $region42: #{neural_network_forward.1} parent=1 // pred_check
      _
    $region43: #{neural_network_forward.1} parent=1 // pred_check_branch
      %418 = sbr.rel (0) target = $region45
    $region44: #{neural_network_forward.1} parent=1 // pred_region
      %419 = dma.done [#allocation5], 16
    $region45: #{neural_network_forward.1} parent=1 // pred_fallthru
      _
    %420 = vsyncpa [#allocation4], 1
    %421 = vsyncpa [#allocation7], 1
    %422 = vsyncpa [#allocation5], 1

</llo_original>
